<compile_context>
chip_gen: v7x
topology: tpu7x:2x2x1
jax: 0.10.0
libtpu: 0.0.40
codegen_flags: <defaults>
</compile_context>

<pallas_src>
import jax
import jax.numpy as jnp
from jax.experimental import pallas as pl
from jax.experimental.pallas import tpu as pltpu

# ---- module hyperparameters (synthetic, deterministic) ---------------------
TOKEN_EMBED_SIZE = 32
NUM_VOCAB = 128
WEEK_EMBED_SIZE = 8
HOUR_EMBED_SIZE = 8
DURATION_EMBED_SIZE = 16
EMBED_SIZE = (
    TOKEN_EMBED_SIZE + WEEK_EMBED_SIZE + HOUR_EMBED_SIZE + DURATION_EMBED_SIZE
)  # 64

WEEK_VOCAB = 7
HOUR_VOCAB = 24
DURATION_VOCAB = 24

# Fused index space per input row: [token(128) | week(7) | hour(24) | dur(24)]
# padded from 183 up to 256; two rows packed -> 512-wide fused K.
FUSED_K = 256
FUSED_K2 = 2 * FUSED_K                      # 512
OUT_LANES = 2 * EMBED_SIZE                  # 128: two input rows per out row

# Local bases inside each 128-lane week/hour/duration block (compile-time).
HOUR_BASE = WEEK_VOCAB                      # 7
DUR_BASE = WEEK_VOCAB + HOUR_VOCAB          # 31

# Input rows per grid step (must be a multiple of 16 for the output tile).
MAX_TILE_N = 4096


def _round_up(x, m):
    return (x + m - 1) // m * m


# ---------------------------------------------------------------------------
# Kernel
# ---------------------------------------------------------------------------
def hier_embed_kernel(idx_ref, tbl_hi_ref, tbl_lo_ref, out_ref):
    """idx_ref: (T2, 8) int32 raw packed indices
                cols 0-3 = [token, week, hour, dur] of even input row,
                cols 4-7 = same for the following odd input row.
       tbl_hi_ref / tbl_lo_ref: (512, 128) bf16 hi / residual fused tables.
       out_ref: (T2, 128) f32 = two concatenated 64-wide embedding rows."""
    idx = idx_ref[...]                                           # (T2, 8)
    t2 = idx.shape[0]
    # One shared 128-wide local-lane iota; each 128-lane block of the fused
    # space only compares against the index columns that can land in it.
    ll = jax.lax.broadcasted_iota(jnp.int32, (t2, 128), 1)

    def tok_block(t):                         # token: 1 compare / vreg
        return (t == ll).astype(jnp.bfloat16)

    def whd_block(w, h, d):                   # week/hour/dur: 3 cmp + 2 or
        hit = (w == ll) | ((h + HOUR_BASE) == ll) | ((d + DUR_BASE) == ll)
        return hit.astype(jnp.bfloat16)

    multihot = jnp.concatenate(
        [tok_block(idx[:, 0:1]),
         whd_block(idx[:, 1:2], idx[:, 2:3], idx[:, 3:4]),
         tok_block(idx[:, 4:5]),
         whd_block(idx[:, 5:6], idx[:, 6:7], idx[:, 7:8])],
        axis=1)                                                  # (T2, 512) bf16

    # bf16-hi + bf16-residual split: two bf16 MXU matmuls, f32 accumulation.
    # Each output element is a single selected table row, so the result is
    # within ~|w| * 2^-18 of the exact f32 gather.
    acc = jnp.dot(multihot, tbl_hi_ref[...],
                  preferred_element_type=jnp.float32)
    acc = acc + jnp.dot(multihot, tbl_lo_ref[...],
                        preferred_element_type=jnp.float32)
    out_ref[...] = acc
    # Dropout(p=0.1) in eval mode == identity.


# ---------------------------------------------------------------------------
# Wrapper
# ---------------------------------------------------------------------------
def _build_fused_tables(params):
    """Returns bf16 (hi, lo) (512, 128) = block_diag(C, C) hi/residual split,
       C = (256, 64) combined [token; week; hour; duration] table."""
    c = jnp.zeros((FUSED_K, EMBED_SIZE), jnp.float32)
    row = 0
    col = 0
    for t in (params["token"], params["week"], params["hour"],
              params["duration"]):
        r, d = t.shape
        c = c.at[row:row + r, col:col + d].set(t.astype(jnp.float32))
        row += r
        col += d
    fused = jnp.zeros((FUSED_K2, OUT_LANES), jnp.float32)
    fused = fused.at[:FUSED_K, :EMBED_SIZE].set(c)
    fused = fused.at[FUSED_K:, EMBED_SIZE:].set(c)
    hi = fused.astype(jnp.bfloat16)
    lo = (fused - hi.astype(jnp.float32)).astype(jnp.bfloat16)
    return hi, lo


@jax.jit
def hier_embedding_forward(token, week, hour, duration, params):
    """token/week/hour/duration: (B, S) int.  Returns (B, S, EMBED_SIZE) f32."""
    B, S = token.shape
    N = B * S

    # Pack the four raw index streams into one (N_pad/2, 8) array.
    # Offsets into the fused space are compile-time constants in the kernel.
    idx4 = jnp.stack(
        [token.reshape(N), week.reshape(N), hour.reshape(N),
         duration.reshape(N)], axis=-1).astype(jnp.int32)

    # Input rows per grid step: as large as possible, but capped at ~N/2 so
    # the "parallel" grid has >= 2 steps (both v7x TensorCores busy).
    tile_n = min(MAX_TILE_N, _round_up(pl.cdiv(N, 2), 16))
    n_padded = _round_up(N, tile_n)
    if n_padded > N:
        idx4 = jnp.concatenate(
            [idx4, jnp.zeros((n_padded - N, 4), jnp.int32)], axis=0)

    # Pair consecutive rows: the second row of each pair hits the upper half
    # of the fused space so its embedding lands in output lanes 64..127.
    idx8 = idx4.reshape(n_padded // 2, 8)

    tbl_hi, tbl_lo = _build_fused_tables(params)

    tile_out = tile_n // 2
    grid = (n_padded // tile_n,)

    out2 = pl.pallas_call(
        hier_embed_kernel,
        out_shape=jax.ShapeDtypeStruct((n_padded // 2, OUT_LANES), jnp.float32),
        grid=grid,
        in_specs=[
            pl.BlockSpec((tile_out, 8), lambda i: (i, 0)),
            # Grid-invariant tables: constant index_map -> DMA'd once.
            pl.BlockSpec((FUSED_K2, OUT_LANES), lambda i: (0, 0)),
            pl.BlockSpec((FUSED_K2, OUT_LANES), lambda i: (0, 0)),
        ],
        out_specs=pl.BlockSpec((tile_out, OUT_LANES), lambda i: (i, 0)),
        compiler_params=pltpu.CompilerParams(
            dimension_semantics=("parallel",)),
    )(idx8, tbl_hi, tbl_lo)

    out = out2.reshape(n_padded, EMBED_SIZE)[:N]
    return out.reshape(B, S, EMBED_SIZE)


def init_params(key):
    k_tok, k_wk, k_hr, k_du = jax.random.split(key, 4)
    bound = 0.5 / TOKEN_EMBED_SIZE
    return {
        # token_embed.weight.data.uniform_(-0.5/d, 0.5/d)
        "token": jax.random.uniform(
            k_tok, (NUM_VOCAB, TOKEN_EMBED_SIZE), jnp.float32,
            minval=-bound, maxval=bound),
        # nn.Embedding default init: N(0, 1)
        "week": jax.random.normal(k_wk, (WEEK_VOCAB, WEEK_EMBED_SIZE),
                                  jnp.float32),
        "hour": jax.random.normal(k_hr, (HOUR_VOCAB, HOUR_EMBED_SIZE),
                                  jnp.float32),
        "duration": jax.random.normal(
            k_du, (DURATION_VOCAB, DURATION_EMBED_SIZE), jnp.float32),
    }


if __name__ == "__main__":
    key = jax.random.PRNGKey(0)
    k_params, k_tok, k_wk, k_hr, k_du = jax.random.split(key, 5)

    params = init_params(k_params)

    B, S = 2, 8
    token = jax.random.randint(k_tok, (B, S), 0, NUM_VOCAB, dtype=jnp.int32)
    week = jax.random.randint(k_wk, (B, S), 0, WEEK_VOCAB, dtype=jnp.int32)
    hour = jax.random.randint(k_hr, (B, S), 0, HOUR_VOCAB, dtype=jnp.int32)
    duration = jax.random.randint(k_du, (B, S), 0, DURATION_VOCAB,
                                  dtype=jnp.int32)

    out = hier_embedding_forward(token, week, hour, duration, params)
    out = jax.block_until_ready(out)

    # Reference: plain JAX embedding lookup + concat (eval-mode dropout).
    ref = jnp.concatenate(
        [params["token"][token], params["week"][week],
         params["hour"][hour], params["duration"][duration]], axis=-1)
    assert out.shape == (B, S, EMBED_SIZE)
    # bf16-hi + residual split keeps |err| <~ |w| * 2^-18 (~1e-5 abs here).
    assert jnp.allclose(out, ref, atol=1e-4, rtol=1e-5), "mismatch vs reference"

    print("KERNEL_OK")
</pallas_src>

<mosaic_0001>
module attributes {stable_mosaic.version = 11 : i64} {
  func.func @hier_embed_kernel(%arg0: i32, %arg1: memref<8x8xi32, #tpu.memory_space<vmem>>, %arg2: memref<512x128xbf16, #tpu.memory_space<vmem>>, %arg3: memref<512x128xbf16, #tpu.memory_space<vmem>>, %arg4: memref<8x128xf32, #tpu.memory_space<vmem>>) attributes {dimension_semantics = [#tpu.dimension_semantics<parallel>], iteration_bounds = array<i64: 1>, scalar_prefetch = 0 : i64, scratch_operands = 0 : i64, tpu.core_type = #tpu.core_type<tc>, window_params = [{transform_indices = @transform_0, window_bounds = array<i64: 8, 8>}, {pipeline_mode = #tpu.pipeline_mode<synchronous>, transform_indices = @transform_1, window_bounds = array<i64: 512, 128>}, {pipeline_mode = #tpu.pipeline_mode<synchronous>, transform_indices = @transform_2, window_bounds = array<i64: 512, 128>}, {transform_indices = @transform_3, window_bounds = array<i64: 8, 128>}]} {
    %c0 = arith.constant 0 : index
    %c0_0 = arith.constant 0 : index
    %0 = vector.load %arg1[%c0, %c0_0] : memref<8x8xi32, #tpu.memory_space<vmem>>, vector<8x8xi32>
    %1 = tpu.iota {dimensions = array<i32: 1>} : vector<8x128xi32>
    %2 = vector.extract_strided_slice %0 {offsets = [0, 0], sizes = [8, 1], strides = [1, 1]} : vector<8x8xi32> to vector<8x1xi32>
    %3 = vector.broadcast %2 : vector<8x1xi32> to vector<8x128xi32>
    %4 = arith.cmpi eq, %3, %1 : vector<8x128xi32>
    %5 = arith.extui %4 : vector<8x128xi1> to vector<8x128xi32>
    %6 = arith.sitofp %5 : vector<8x128xi32> to vector<8x128xf32>
    %7 = arith.truncf %6 : vector<8x128xf32> to vector<8x128xbf16>
    %8 = vector.extract_strided_slice %0 {offsets = [0, 1], sizes = [8, 1], strides = [1, 1]} : vector<8x8xi32> to vector<8x1xi32>
    %9 = vector.extract_strided_slice %0 {offsets = [0, 2], sizes = [8, 1], strides = [1, 1]} : vector<8x8xi32> to vector<8x1xi32>
    %10 = vector.extract_strided_slice %0 {offsets = [0, 3], sizes = [8, 1], strides = [1, 1]} : vector<8x8xi32> to vector<8x1xi32>
    %11 = vector.broadcast %8 : vector<8x1xi32> to vector<8x128xi32>
    %12 = arith.cmpi eq, %11, %1 : vector<8x128xi32>
    %c7_i32 = arith.constant 7 : i32
    %13 = vector.broadcast %c7_i32 : i32 to vector<8x1xi32>
    %14 = arith.addi %9, %13 : vector<8x1xi32>
    %15 = vector.broadcast %14 : vector<8x1xi32> to vector<8x128xi32>
    %16 = arith.cmpi eq, %15, %1 : vector<8x128xi32>
    %17 = arith.ori %12, %16 : vector<8x128xi1>
    %c31_i32 = arith.constant 31 : i32
    %18 = vector.broadcast %c31_i32 : i32 to vector<8x1xi32>
    %19 = arith.addi %10, %18 : vector<8x1xi32>
    %20 = vector.broadcast %19 : vector<8x1xi32> to vector<8x128xi32>
    %21 = arith.cmpi eq, %20, %1 : vector<8x128xi32>
    %22 = arith.ori %17, %21 : vector<8x128xi1>
    %23 = arith.extui %22 : vector<8x128xi1> to vector<8x128xi32>
    %24 = arith.sitofp %23 : vector<8x128xi32> to vector<8x128xf32>
    %25 = arith.truncf %24 : vector<8x128xf32> to vector<8x128xbf16>
    %26 = vector.extract_strided_slice %0 {offsets = [0, 4], sizes = [8, 1], strides = [1, 1]} : vector<8x8xi32> to vector<8x1xi32>
    %27 = vector.broadcast %26 : vector<8x1xi32> to vector<8x128xi32>
    %28 = arith.cmpi eq, %27, %1 : vector<8x128xi32>
    %29 = arith.extui %28 : vector<8x128xi1> to vector<8x128xi32>
    %30 = arith.sitofp %29 : vector<8x128xi32> to vector<8x128xf32>
    %31 = arith.truncf %30 : vector<8x128xf32> to vector<8x128xbf16>
    %32 = vector.extract_strided_slice %0 {offsets = [0, 5], sizes = [8, 1], strides = [1, 1]} : vector<8x8xi32> to vector<8x1xi32>
    %33 = vector.extract_strided_slice %0 {offsets = [0, 6], sizes = [8, 1], strides = [1, 1]} : vector<8x8xi32> to vector<8x1xi32>
    %34 = vector.extract_strided_slice %0 {offsets = [0, 7], sizes = [8, 1], strides = [1, 1]} : vector<8x8xi32> to vector<8x1xi32>
    %35 = vector.broadcast %32 : vector<8x1xi32> to vector<8x128xi32>
    %36 = arith.cmpi eq, %35, %1 : vector<8x128xi32>
    %c7_i32_1 = arith.constant 7 : i32
    %37 = vector.broadcast %c7_i32_1 : i32 to vector<8x1xi32>
    %38 = arith.addi %33, %37 : vector<8x1xi32>
    %39 = vector.broadcast %38 : vector<8x1xi32> to vector<8x128xi32>
    %40 = arith.cmpi eq, %39, %1 : vector<8x128xi32>
    %41 = arith.ori %36, %40 : vector<8x128xi1>
    %c31_i32_2 = arith.constant 31 : i32
    %42 = vector.broadcast %c31_i32_2 : i32 to vector<8x1xi32>
    %43 = arith.addi %34, %42 : vector<8x1xi32>
    %44 = vector.broadcast %43 : vector<8x1xi32> to vector<8x128xi32>
    %45 = arith.cmpi eq, %44, %1 : vector<8x128xi32>
    %46 = arith.ori %41, %45 : vector<8x128xi1>
    %47 = arith.extui %46 : vector<8x128xi1> to vector<8x128xi32>
    %48 = arith.sitofp %47 : vector<8x128xi32> to vector<8x128xf32>
    %49 = arith.truncf %48 : vector<8x128xf32> to vector<8x128xbf16>
    %50 = tpu.concatenate %7, %25, %31, %49 in 1 : vector<8x128xbf16>, vector<8x128xbf16>, vector<8x128xbf16>, vector<8x128xbf16> -> vector<8x512xbf16>
    %c0_3 = arith.constant 0 : index
    %c0_4 = arith.constant 0 : index
    %51 = vector.load %arg2[%c0_3, %c0_4] : memref<512x128xbf16, #tpu.memory_space<vmem>>, vector<512x128xbf16>
    %cst = arith.constant dense<0.000000e+00> : vector<8x128xf32>
    %52 = tpu.matmul %50, %51, %cst {dimension_numbers = #tpu.dot_dimension_numbers<[1], [0], [0], [1], [0, 0, 1, 1], [], []>} : vector<8x512xbf16>, vector<512x128xbf16>, vector<8x128xf32> -> vector<8x128xf32>
    %c0_5 = arith.constant 0 : index
    %c0_6 = arith.constant 0 : index
    %53 = vector.load %arg3[%c0_5, %c0_6] : memref<512x128xbf16, #tpu.memory_space<vmem>>, vector<512x128xbf16>
    %cst_7 = arith.constant dense<0.000000e+00> : vector<8x128xf32>
    %54 = tpu.matmul %50, %53, %cst_7 {dimension_numbers = #tpu.dot_dimension_numbers<[1], [0], [0], [1], [0, 0, 1, 1], [], []>} : vector<8x512xbf16>, vector<512x128xbf16>, vector<8x128xf32> -> vector<8x128xf32>
    %55 = arith.addf %52, %54 : vector<8x128xf32>
    %c0_8 = arith.constant 0 : index
    %c0_9 = arith.constant 0 : index
    %56 = vector.load %arg4[%c0_8, %c0_9] : memref<8x128xf32, #tpu.memory_space<vmem>>, vector<8x128xf32>
    tpu.vector_store %arg4[%c0_8, %c0_9], %55 {strides = array<i32>} : memref<8x128xf32, #tpu.memory_space<vmem>>, vector<8x128xf32>,
    return
  }
  func.func @transform_0(%arg0: i32) -> (i32, i32) {
    %c0_i32 = arith.constant 0 : i32
    %c0_i32_0 = arith.constant 0 : i32
    return %arg0, %c0_i32 : i32, i32
  }
  func.func @transform_1(%arg0: i32) -> (i32, i32) {
    %c0_i32 = arith.constant 0 : i32
    %c0_i32_0 = arith.constant 0 : i32
    %c0_i32_1 = arith.constant 0 : i32
    return %c0_i32, %c0_i32_0 : i32, i32
  }
  func.func @transform_2(%arg0: i32) -> (i32, i32) {
    %c0_i32 = arith.constant 0 : i32
    %c0_i32_0 = arith.constant 0 : i32
    %c0_i32_1 = arith.constant 0 : i32
    return %c0_i32, %c0_i32_0 : i32, i32
  }
  func.func @transform_3(%arg0: i32) -> (i32, i32) {
    %c0_i32 = arith.constant 0 : i32
    %c0_i32_0 = arith.constant 0 : i32
    return %arg0, %c0_i32 : i32, i32
  }
}

</mosaic_0001>

<llo_original>
// kernel: hier_embedding_forward.1
$region0: #{hier_embedding_forward.1}
  #allocation0 [shape = 'u32[]', space=smem, size = 0x4, offset = 0x4, fixed_abs, tag = 'smem constant byte address 0x4 - core index']
  #allocation1 [shape = 'u32[144,128]{1,0:T(1,128)}', space=vmem, size = 0x12000, scoped, tag = 'internal scratch']
  %s0 = inlined_call_operand.vmem [shape: s32[8,8], index: 0, kind: input, shape index: {}]
  %s1 = inlined_call_operand.vmem [shape: bf16[512,128], index: 1, kind: input, shape index: {}]
  %s2 = inlined_call_operand.vmem [shape: bf16[512,128], index: 2, kind: input, shape index: {}]
  %s3 = inlined_call_operand.vmem [shape: f32[8,128], index: 3, kind: output, shape index: {}]
  %s4 = sld [smem:[#allocation0]]
  $region22: #{hier_embedding_forward.1} parent=0
    _
  %s6 = ssub.s32 1, %s4
  %s7 = scalar_select 0, %s6, %s4
  // Predicated region
  $region2: #{hier_embedding_forward.1} parent=0 // pred_check
    _
  $region3: #{hier_embedding_forward.1} parent=0 // pred_check_branch
    %9 = sbr.rel (0) target = $region5
  $region4: #{hier_embedding_forward.1} parent=0 // pred_region
    _
  $region5: #{hier_embedding_forward.1} parent=0 // pred_fallthru
    _
  // Predicated region
  $region6: #{hier_embedding_forward.1} parent=0 // pred_check
    _
  $region7: #{hier_embedding_forward.1} parent=0 // pred_check_branch
    %11 = sbr.rel (0) target = $region9
  $region8: #{hier_embedding_forward.1} parent=0 // pred_region
    _
  $region9: #{hier_embedding_forward.1} parent=0 // pred_fallthru
    _
  // Predicated region
  $region10: #{hier_embedding_forward.1} parent=0 // pred_check
    _
  $region11: #{hier_embedding_forward.1} parent=0 // pred_check_branch
    %13 = sbr.rel (0) target = $region13
  $region12: #{hier_embedding_forward.1} parent=0 // pred_region
    _
  $region13: #{hier_embedding_forward.1} parent=0 // pred_fallthru
    _
  %v15 = vld [vmem:[%s0] sm:$0xff]
  %v16 = vlaneseq
  %v17 = vand.u32 %v16, 127
  %18 = vset.pattern.permute.xlu0 0
  %19 = vperm.xlu0 %18, %v15
  %v20 = vpop.permute.xlu0 %19
  %vm21 = vcmp.eq.s32.totalorder %v20, %v17
  %v22 = vsel %vm21, 1, 0
  %v23 = vcvt.s32.f32 %v22
  %v24 = vpack.c.bf16 %v23, %v23
  %25 = vset.pattern.permute.xlu0 1
  %26 = vperm.xlu0 %25, %v15
  %v27 = vpop.permute.xlu0 %26
  %vm28 = vcmp.eq.s32.totalorder %v27, %v17
  %v29 = vadd.s32 %v15, 7
  %30 = vset.pattern.permute.xlu0 2
  %31 = vperm.xlu0 %30, %v29
  %v32 = vpop.permute.xlu0 %31
  %vm33 = vcmp.eq.s32.totalorder %v32, %v17
  %vm34 = vmor %vm28, %vm33
  %v35 = vadd.s32 %v15, 31
  %36 = vset.pattern.permute.xlu0 3
  %37 = vperm.xlu0 %36, %v35
  %v38 = vpop.permute.xlu0 %37
  %vm39 = vcmp.eq.s32.totalorder %v38, %v17
  %vm40 = vmor %vm34, %vm39
  %v41 = vsel %vm40, 1, 0
  %v42 = vcvt.s32.f32 %v41
  %v43 = vpack.c.bf16 %v42, %v42
  %44 = vset.pattern.permute.xlu0 4
  %45 = vperm.xlu0 %44, %v15
  %v46 = vpop.permute.xlu0 %45
  %vm47 = vcmp.eq.s32.totalorder %v46, %v17
  %v48 = vsel %vm47, 1, 0
  %v49 = vcvt.s32.f32 %v48
  %v50 = vpack.c.bf16 %v49, %v49
  %51 = vset.pattern.permute.xlu0 5
  %52 = vperm.xlu0 %51, %v15
  %v53 = vpop.permute.xlu0 %52
  %vm54 = vcmp.eq.s32.totalorder %v53, %v17
  %55 = vset.pattern.permute.xlu0 6
  %56 = vperm.xlu0 %55, %v29
  %v57 = vpop.permute.xlu0 %56
  %vm58 = vcmp.eq.s32.totalorder %v57, %v17
  %vm59 = vmor %vm54, %vm58
  %60 = vset.pattern.permute.xlu0 7
  %61 = vperm.xlu0 %60, %v35
  %v62 = vpop.permute.xlu0 %61
  %vm63 = vcmp.eq.s32.totalorder %v62, %v17
  %vm64 = vmor %vm59, %vm63
  %v65 = vsel %vm64, 1, 0
  %v66 = vcvt.s32.f32 %v65
  %v67 = vpack.c.bf16 %v66, %v66
  %v68 = vld [vmem:[%s1] sm:$0xf]
  %v69 = vld [vmem:[%s1 + $0x4] sm:$0xf]
  %v70 = vld [vmem:[%s1 + $0x8] sm:$0xf]
  %v71 = vld [vmem:[%s1 + $0xc] sm:$0xf]
  %v72 = vld [vmem:[%s1 + $0x10] sm:$0xf]
  %v73 = vld [vmem:[%s1 + $0x14] sm:$0xf]
  %v74 = vld [vmem:[%s1 + $0x18] sm:$0xf]
  %v75 = vld [vmem:[%s1 + $0x1c] sm:$0xf]
  %v76 = vld [vmem:[%s1 + $0x20] sm:$0xf]
  %v77 = vld [vmem:[%s1 + $0x24] sm:$0xf]
  %v78 = vld [vmem:[%s1 + $0x28] sm:$0xf]
  %v79 = vld [vmem:[%s1 + $0x2c] sm:$0xf]
  %v80 = vld [vmem:[%s1 + $0x30] sm:$0xf]
  %v81 = vld [vmem:[%s1 + $0x34] sm:$0xf]
  %v82 = vld [vmem:[%s1 + $0x38] sm:$0xf]
  %v83 = vld [vmem:[%s1 + $0x3c] sm:$0xf]
  %v84 = vld [vmem:[%s1 + $0x40] sm:$0xf]
  %v85 = vld [vmem:[%s1 + $0x44] sm:$0xf]
  %v86 = vld [vmem:[%s1 + $0x48] sm:$0xf]
  %v87 = vld [vmem:[%s1 + $0x4c] sm:$0xf]
  %v88 = vld [vmem:[%s1 + $0x50] sm:$0xf]
  %v89 = vld [vmem:[%s1 + $0x54] sm:$0xf]
  %v90 = vld [vmem:[%s1 + $0x58] sm:$0xf]
  %v91 = vld [vmem:[%s1 + $0x5c] sm:$0xf]
  %v92 = vld [vmem:[%s1 + $0x60] sm:$0xf]
  %v93 = vld [vmem:[%s1 + $0x64] sm:$0xf]
  %v94 = vld [vmem:[%s1 + $0x68] sm:$0xf]
  %v95 = vld [vmem:[%s1 + $0x6c] sm:$0xf]
  %v96 = vld [vmem:[%s1 + $0x70] sm:$0xf]
  %v97 = vld [vmem:[%s1 + $0x74] sm:$0xf]
  %v98 = vld [vmem:[%s1 + $0x78] sm:$0xf]
  %v99 = vld [vmem:[%s1 + $0x7c] sm:$0xf]
  %v100 = vld [vmem:[%s1 + $0x80] sm:$0xf]
  %v101 = vld [vmem:[%s1 + $0x84] sm:$0xf]
  %v102 = vld [vmem:[%s1 + $0x88] sm:$0xf]
  %v103 = vld [vmem:[%s1 + $0x8c] sm:$0xf]
  %v104 = vld [vmem:[%s1 + $0x90] sm:$0xf]
  %v105 = vld [vmem:[%s1 + $0x94] sm:$0xf]
  %v106 = vld [vmem:[%s1 + $0x98] sm:$0xf]
  %v107 = vld [vmem:[%s1 + $0x9c] sm:$0xf]
  %v108 = vld [vmem:[%s1 + $0xa0] sm:$0xf]
  %v109 = vld [vmem:[%s1 + $0xa4] sm:$0xf]
  %v110 = vld [vmem:[%s1 + $0xa8] sm:$0xf]
  %v111 = vld [vmem:[%s1 + $0xac] sm:$0xf]
  %v112 = vld [vmem:[%s1 + $0xb0] sm:$0xf]
  %v113 = vld [vmem:[%s1 + $0xb4] sm:$0xf]
  %v114 = vld [vmem:[%s1 + $0xb8] sm:$0xf]
  %v115 = vld [vmem:[%s1 + $0xbc] sm:$0xf]
  %v116 = vld [vmem:[%s1 + $0xc0] sm:$0xf]
  %v117 = vld [vmem:[%s1 + $0xc4] sm:$0xf]
  %v118 = vld [vmem:[%s1 + $0xc8] sm:$0xf]
  %v119 = vld [vmem:[%s1 + $0xcc] sm:$0xf]
  %v120 = vld [vmem:[%s1 + $0xd0] sm:$0xf]
  %v121 = vld [vmem:[%s1 + $0xd4] sm:$0xf]
  %v122 = vld [vmem:[%s1 + $0xd8] sm:$0xf]
  %v123 = vld [vmem:[%s1 + $0xdc] sm:$0xf]
  %v124 = vld [vmem:[%s1 + $0xe0] sm:$0xf]
  %v125 = vld [vmem:[%s1 + $0xe4] sm:$0xf]
  %v126 = vld [vmem:[%s1 + $0xe8] sm:$0xf]
  %v127 = vld [vmem:[%s1 + $0xec] sm:$0xf]
  %v128 = vld [vmem:[%s1 + $0xf0] sm:$0xf]
  %v129 = vld [vmem:[%s1 + $0xf4] sm:$0xf]
  %v130 = vld [vmem:[%s1 + $0xf8] sm:$0xf]
  %v131 = vld [vmem:[%s1 + $0xfc] sm:$0xf]
  %v132 = vld [vmem:[%s2] sm:$0xf]
  %v133 = vld [vmem:[%s2 + $0x4] sm:$0xf]
  %v134 = vld [vmem:[%s2 + $0x8] sm:$0xf]
  %v135 = vld [vmem:[%s2 + $0xc] sm:$0xf]
  %v136 = vld [vmem:[%s2 + $0x10] sm:$0xf]
  %v137 = vld [vmem:[%s2 + $0x14] sm:$0xf]
  %v138 = vld [vmem:[%s2 + $0x18] sm:$0xf]
  %v139 = vld [vmem:[%s2 + $0x1c] sm:$0xf]
  %v140 = vld [vmem:[%s2 + $0x20] sm:$0xf]
  %v141 = vld [vmem:[%s2 + $0x24] sm:$0xf]
  %v142 = vld [vmem:[%s2 + $0x28] sm:$0xf]
  %v143 = vld [vmem:[%s2 + $0x2c] sm:$0xf]
  %v144 = vld [vmem:[%s2 + $0x30] sm:$0xf]
  %v145 = vld [vmem:[%s2 + $0x34] sm:$0xf]
  %v146 = vld [vmem:[%s2 + $0x38] sm:$0xf]
  %v147 = vld [vmem:[%s2 + $0x3c] sm:$0xf]
  %v148 = vld [vmem:[%s2 + $0x40] sm:$0xf]
  %v149 = vld [vmem:[%s2 + $0x44] sm:$0xf]
  %v150 = vld [vmem:[%s2 + $0x48] sm:$0xf]
  %v151 = vld [vmem:[%s2 + $0x4c] sm:$0xf]
  %v152 = vld [vmem:[%s2 + $0x50] sm:$0xf]
  %v153 = vld [vmem:[%s2 + $0x54] sm:$0xf]
  %v154 = vld [vmem:[%s2 + $0x58] sm:$0xf]
  %v155 = vld [vmem:[%s2 + $0x5c] sm:$0xf]
  %v156 = vld [vmem:[%s2 + $0x60] sm:$0xf]
  %v157 = vld [vmem:[%s2 + $0x64] sm:$0xf]
  %v158 = vld [vmem:[%s2 + $0x68] sm:$0xf]
  %v159 = vld [vmem:[%s2 + $0x6c] sm:$0xf]
  %v160 = vld [vmem:[%s2 + $0x70] sm:$0xf]
  %v161 = vld [vmem:[%s2 + $0x74] sm:$0xf]
  %v162 = vld [vmem:[%s2 + $0x78] sm:$0xf]
  %v163 = vld [vmem:[%s2 + $0x7c] sm:$0xf]
  %v164 = vld [vmem:[%s2 + $0x80] sm:$0xf]
  %v165 = vld [vmem:[%s2 + $0x84] sm:$0xf]
  %v166 = vld [vmem:[%s2 + $0x88] sm:$0xf]
  %v167 = vld [vmem:[%s2 + $0x8c] sm:$0xf]
  %v168 = vld [vmem:[%s2 + $0x90] sm:$0xf]
  %v169 = vld [vmem:[%s2 + $0x94] sm:$0xf]
  %v170 = vld [vmem:[%s2 + $0x98] sm:$0xf]
  %v171 = vld [vmem:[%s2 + $0x9c] sm:$0xf]
  %v172 = vld [vmem:[%s2 + $0xa0] sm:$0xf]
  %v173 = vld [vmem:[%s2 + $0xa4] sm:$0xf]
  %v174 = vld [vmem:[%s2 + $0xa8] sm:$0xf]
  %v175 = vld [vmem:[%s2 + $0xac] sm:$0xf]
  %v176 = vld [vmem:[%s2 + $0xb0] sm:$0xf]
  %v177 = vld [vmem:[%s2 + $0xb4] sm:$0xf]
  %v178 = vld [vmem:[%s2 + $0xb8] sm:$0xf]
  %v179 = vld [vmem:[%s2 + $0xbc] sm:$0xf]
  %v180 = vld [vmem:[%s2 + $0xc0] sm:$0xf]
  %v181 = vld [vmem:[%s2 + $0xc4] sm:$0xf]
  %v182 = vld [vmem:[%s2 + $0xc8] sm:$0xf]
  %v183 = vld [vmem:[%s2 + $0xcc] sm:$0xf]
  %v184 = vld [vmem:[%s2 + $0xd0] sm:$0xf]
  %v185 = vld [vmem:[%s2 + $0xd4] sm:$0xf]
  %v186 = vld [vmem:[%s2 + $0xd8] sm:$0xf]
  %v187 = vld [vmem:[%s2 + $0xdc] sm:$0xf]
  %v188 = vld [vmem:[%s2 + $0xe0] sm:$0xf]
  %v189 = vld [vmem:[%s2 + $0xe4] sm:$0xf]
  %v190 = vld [vmem:[%s2 + $0xe8] sm:$0xf]
  %v191 = vld [vmem:[%s2 + $0xec] sm:$0xf]
  %v192 = vld [vmem:[%s2 + $0xf0] sm:$0xf]
  %v193 = vld [vmem:[%s2 + $0xf4] sm:$0xf]
  %v194 = vld [vmem:[%s2 + $0xf8] sm:$0xf]
  %v195 = vld [vmem:[%s2 + $0xfc] sm:$0xf]
  %v260 = vunpack.c.l.b16 %v132
  %v261 = vunpack.c.l.b16 %v133
  %v262 = vunpack.c.l.b16 %v134
  %v263 = vunpack.c.l.b16 %v135
  %v264 = vunpack.c.l.b16 %v136
  %v265 = vunpack.c.l.b16 %v137
  %v266 = vunpack.c.l.b16 %v138
  %v267 = vunpack.c.l.b16 %v139
  %v268 = vunpack.c.l.b16 %v140
  %v269 = vunpack.c.l.b16 %v141
  %v270 = vunpack.c.l.b16 %v142
  %v271 = vunpack.c.l.b16 %v143
  %v272 = vunpack.c.l.b16 %v144
  %v273 = vunpack.c.l.b16 %v145
  %v274 = vunpack.c.l.b16 %v146
  %v275 = vunpack.c.l.b16 %v147
  %v276 = vunpack.c.l.b16 %v148
  %v277 = vunpack.c.l.b16 %v149
  %v278 = vunpack.c.l.b16 %v150
  %v279 = vunpack.c.l.b16 %v151
  %v280 = vunpack.c.l.b16 %v152
  %v281 = vunpack.c.l.b16 %v153
  %v282 = vunpack.c.l.b16 %v154
  %v283 = vunpack.c.l.b16 %v155
  %v284 = vunpack.c.l.b16 %v156
  %v285 = vunpack.c.l.b16 %v157
  %v286 = vunpack.c.l.b16 %v158
  %v287 = vunpack.c.l.b16 %v159
  %v288 = vunpack.c.l.b16 %v160
  %v289 = vunpack.c.l.b16 %v161
  %v290 = vunpack.c.l.b16 %v162
  %v291 = vunpack.c.l.b16 %v163
  %v292 = vunpack.c.l.b16 %v164
  %v293 = vunpack.c.l.b16 %v165
  %v294 = vunpack.c.l.b16 %v166
  %v295 = vunpack.c.l.b16 %v167
  %v296 = vunpack.c.l.b16 %v168
  %v297 = vunpack.c.l.b16 %v169
  %v298 = vunpack.c.l.b16 %v170
  %v299 = vunpack.c.l.b16 %v171
  %v300 = vunpack.c.l.b16 %v172
  %v301 = vunpack.c.l.b16 %v173
  %v302 = vunpack.c.l.b16 %v174
  %v303 = vunpack.c.l.b16 %v175
  %v304 = vunpack.c.l.b16 %v176
  %v305 = vunpack.c.l.b16 %v177
  %v306 = vunpack.c.l.b16 %v178
  %v307 = vunpack.c.l.b16 %v179
  %v308 = vunpack.c.l.b16 %v180
  %v309 = vunpack.c.l.b16 %v181
  %v310 = vunpack.c.l.b16 %v182
  %v311 = vunpack.c.l.b16 %v183
  %v312 = vunpack.c.l.b16 %v184
  %v313 = vunpack.c.l.b16 %v185
  %v314 = vunpack.c.l.b16 %v186
  %v315 = vunpack.c.l.b16 %v187
  %v316 = vunpack.c.l.b16 %v188
  %v317 = vunpack.c.l.b16 %v189
  %v318 = vunpack.c.l.b16 %v190
  %v319 = vunpack.c.l.b16 %v191
  %v320 = vunpack.c.l.b16 %v192
  %v321 = vunpack.c.l.b16 %v193
  %v322 = vunpack.c.l.b16 %v194
  %v323 = vunpack.c.l.b16 %v195
  %v324 = vpack.c.b16 %v261, %v260
  %v325 = vpack.c.b16 %v263, %v262
  %v326 = vpack.c.b16 %v265, %v264
  %v327 = vpack.c.b16 %v267, %v266
  %v328 = vpack.c.b16 %v269, %v268
  %v329 = vpack.c.b16 %v271, %v270
  %v330 = vpack.c.b16 %v273, %v272
  %v331 = vpack.c.b16 %v275, %v274
  %v332 = vpack.c.b16 %v277, %v276
  %v333 = vpack.c.b16 %v279, %v278
  %v334 = vpack.c.b16 %v281, %v280
  %v335 = vpack.c.b16 %v283, %v282
  %v336 = vpack.c.b16 %v285, %v284
  %v337 = vpack.c.b16 %v287, %v286
  %v338 = vpack.c.b16 %v289, %v288
  %v339 = vpack.c.b16 %v291, %v290
  %v340 = vpack.c.b16 %v293, %v292
  %v341 = vpack.c.b16 %v295, %v294
  %v342 = vpack.c.b16 %v297, %v296
  %v343 = vpack.c.b16 %v299, %v298
  %v344 = vpack.c.b16 %v301, %v300
  %v345 = vpack.c.b16 %v303, %v302
  %v346 = vpack.c.b16 %v305, %v304
  %v347 = vpack.c.b16 %v307, %v306
  %v348 = vpack.c.b16 %v309, %v308
  %v349 = vpack.c.b16 %v311, %v310
  %v350 = vpack.c.b16 %v313, %v312
  %v351 = vpack.c.b16 %v315, %v314
  %v352 = vpack.c.b16 %v317, %v316
  %v353 = vpack.c.b16 %v319, %v318
  %v354 = vpack.c.b16 %v321, %v320
  %v355 = vpack.c.b16 %v323, %v322
  %388 = vmatprep.subr.bf16.mxu0 0
  %389 = vmatpush1.bf16.msra.mxu0 %v324
  %390 = vmatprep.subr.bf16.mxu0 0
  %391 = vmatpush1.bf16.msra.mxu0 %v325
  %392 = vmatprep.subr.bf16.mxu0 0
  %393 = vmatpush1.bf16.msra.mxu0 %v326
  %394 = vmatprep.subr.bf16.mxu0 0
  %395 = vmatpush1.bf16.msra.mxu0 %v327
  %396 = vmatprep.subr.bf16.mxu0 0
  %397 = vmatpush1.bf16.msra.mxu0 %v328
  %398 = vmatprep.subr.bf16.mxu0 0
  %399 = vmatpush1.bf16.msra.mxu0 %v329
  %400 = vmatprep.subr.bf16.mxu0 0
  %401 = vmatpush1.bf16.msra.mxu0 %v330
  %402 = vmatprep.subr.bf16.mxu0 0
  %403 = vmatpush1.bf16.msra.mxu0 %v331
  %404 = vmatprep.subr.bf16.mxu0 0
  %405 = vmatpush1.bf16.msra.mxu0 %v332
  %406 = vmatprep.subr.bf16.mxu0 0
  %407 = vmatpush1.bf16.msra.mxu0 %v333
  %408 = vmatprep.subr.bf16.mxu0 0
  %409 = vmatpush1.bf16.msra.mxu0 %v334
  %410 = vmatprep.subr.bf16.mxu0 0
  %411 = vmatpush1.bf16.msra.mxu0 %v335
  %412 = vmatprep.subr.bf16.mxu0 0
  %413 = vmatpush1.bf16.msra.mxu0 %v336
  %414 = vmatprep.subr.bf16.mxu0 0
  %415 = vmatpush1.bf16.msra.mxu0 %v337
  %416 = vmatprep.subr.bf16.mxu0 0
  %417 = vmatpush1.bf16.msra.mxu0 %v338
  %418 = vmatprep.subr.bf16.mxu0 0
  %419 = vmatpush1.bf16.msra.mxu0 %v339
  %420 = vmatprep.mubr.bf16.mxu0 %v43
  %421 = vmatmul.mubr.bf16.gmra.mrb[0].mxu0 %v24
  %v422 = vpop.f32.mrb[0].mxu0
  %v423 = vadd.f32 0.0, %v422
  %v424 = vpop.f32.mrb[0].mxu0
  %v425 = vpop.f32.mrb[0].mxu0
  %v426 = vpop.f32.mrb[0].mxu0
  %427 = vdwg.mxu0
  %428 = vmatprep.subr.bf16.mxu0 0
  %429 = vmatpush1.bf16.msra.mxu0 %v340
  %430 = vmatprep.subr.bf16.mxu0 0
  %431 = vmatpush1.bf16.msra.mxu0 %v341
  %432 = vmatprep.subr.bf16.mxu0 0
  %433 = vmatpush1.bf16.msra.mxu0 %v342
  %434 = vmatprep.subr.bf16.mxu0 0
  %435 = vmatpush1.bf16.msra.mxu0 %v343
  %436 = vmatprep.subr.bf16.mxu0 0
  %437 = vmatpush1.bf16.msra.mxu0 %v344
  %438 = vmatprep.subr.bf16.mxu0 0
  %439 = vmatpush1.bf16.msra.mxu0 %v345
  %440 = vmatprep.subr.bf16.mxu0 0
  %441 = vmatpush1.bf16.msra.mxu0 %v346
  %442 = vmatprep.subr.bf16.mxu0 0
  %443 = vmatpush1.bf16.msra.mxu0 %v347
  %444 = vmatprep.subr.bf16.mxu0 0
  %445 = vmatpush1.bf16.msra.mxu0 %v348
  %446 = vmatprep.subr.bf16.mxu0 0
  %447 = vmatpush1.bf16.msra.mxu0 %v349
  %448 = vmatprep.subr.bf16.mxu0 0
  %449 = vmatpush1.bf16.msra.mxu0 %v350
  %450 = vmatprep.subr.bf16.mxu0 0
  %451 = vmatpush1.bf16.msra.mxu0 %v351
  %452 = vmatprep.subr.bf16.mxu0 0
  %453 = vmatpush1.bf16.msra.mxu0 %v352
  %454 = vmatprep.subr.bf16.mxu0 0
  %455 = vmatpush1.bf16.msra.mxu0 %v353
  %456 = vmatprep.subr.bf16.mxu0 0
  %457 = vmatpush1.bf16.msra.mxu0 %v354
  %458 = vmatprep.subr.bf16.mxu0 0
  %459 = vmatpush1.bf16.msra.mxu0 %v355
  %460 = vmatprep.mubr.bf16.mxu0 %v67
  %461 = vmatmul.mubr.bf16.gmra.mrb[0].mxu0 %v50
  %v462 = vpop.f32.mrb[0].mxu0
  %v463 = vadd.f32 %v423, %v462
  %v464 = vpop.f32.mrb[0].mxu0
  %v465 = vpop.f32.mrb[0].mxu0
  %v466 = vpop.f32.mrb[0].mxu0
  %467 = vdwg.mxu0
  %v532 = vunpack.c.l.b16 %v68
  %v533 = vunpack.c.l.b16 %v69
  %v534 = vunpack.c.l.b16 %v70
  %v535 = vunpack.c.l.b16 %v71
  %v536 = vunpack.c.l.b16 %v72
  %v537 = vunpack.c.l.b16 %v73
  %v538 = vunpack.c.l.b16 %v74
  %v539 = vunpack.c.l.b16 %v75
  %v540 = vunpack.c.l.b16 %v76
  %v541 = vunpack.c.l.b16 %v77
  %v542 = vunpack.c.l.b16 %v78
  %v543 = vunpack.c.l.b16 %v79
  %v544 = vunpack.c.l.b16 %v80
  %v545 = vunpack.c.l.b16 %v81
  %v546 = vunpack.c.l.b16 %v82
  %v547 = vunpack.c.l.b16 %v83
  %v548 = vunpack.c.l.b16 %v84
  %v549 = vunpack.c.l.b16 %v85
  %v550 = vunpack.c.l.b16 %v86
  %v551 = vunpack.c.l.b16 %v87
  %v552 = vunpack.c.l.b16 %v88
  %v553 = vunpack.c.l.b16 %v89
  %v554 = vunpack.c.l.b16 %v90
  %v555 = vunpack.c.l.b16 %v91
  %v556 = vunpack.c.l.b16 %v92
  %v557 = vunpack.c.l.b16 %v93
  %v558 = vunpack.c.l.b16 %v94
  %v559 = vunpack.c.l.b16 %v95
  %v560 = vunpack.c.l.b16 %v96
  %v561 = vunpack.c.l.b16 %v97
  %v562 = vunpack.c.l.b16 %v98
  %v563 = vunpack.c.l.b16 %v99
  %v564 = vunpack.c.l.b16 %v100
  %v565 = vunpack.c.l.b16 %v101
  %v566 = vunpack.c.l.b16 %v102
  %v567 = vunpack.c.l.b16 %v103
  %v568 = vunpack.c.l.b16 %v104
  %v569 = vunpack.c.l.b16 %v105
  %v570 = vunpack.c.l.b16 %v106
  %v571 = vunpack.c.l.b16 %v107
  %v572 = vunpack.c.l.b16 %v108
  %v573 = vunpack.c.l.b16 %v109
  %v574 = vunpack.c.l.b16 %v110
  %v575 = vunpack.c.l.b16 %v111
  %v576 = vunpack.c.l.b16 %v112
  %v577 = vunpack.c.l.b16 %v113
  %v578 = vunpack.c.l.b16 %v114
  %v579 = vunpack.c.l.b16 %v115
  %v580 = vunpack.c.l.b16 %v116
  %v581 = vunpack.c.l.b16 %v117
  %v582 = vunpack.c.l.b16 %v118
  %v583 = vunpack.c.l.b16 %v119
  %v584 = vunpack.c.l.b16 %v120
  %v585 = vunpack.c.l.b16 %v121
  %v586 = vunpack.c.l.b16 %v122
  %v587 = vunpack.c.l.b16 %v123
  %v588 = vunpack.c.l.b16 %v124
  %v589 = vunpack.c.l.b16 %v125
  %v590 = vunpack.c.l.b16 %v126
  %v591 = vunpack.c.l.b16 %v127
  %v592 = vunpack.c.l.b16 %v128
  %v593 = vunpack.c.l.b16 %v129
  %v594 = vunpack.c.l.b16 %v130
  %v595 = vunpack.c.l.b16 %v131
  %v596 = vpack.c.b16 %v533, %v532
  %v597 = vpack.c.b16 %v535, %v534
  %v598 = vpack.c.b16 %v537, %v536
  %v599 = vpack.c.b16 %v539, %v538
  %v600 = vpack.c.b16 %v541, %v540
  %v601 = vpack.c.b16 %v543, %v542
  %v602 = vpack.c.b16 %v545, %v544
  %v603 = vpack.c.b16 %v547, %v546
  %v604 = vpack.c.b16 %v549, %v548
  %v605 = vpack.c.b16 %v551, %v550
  %v606 = vpack.c.b16 %v553, %v552
  %v607 = vpack.c.b16 %v555, %v554
  %v608 = vpack.c.b16 %v557, %v556
  %v609 = vpack.c.b16 %v559, %v558
  %v610 = vpack.c.b16 %v561, %v560
  %v611 = vpack.c.b16 %v563, %v562
  %v612 = vpack.c.b16 %v565, %v564
  %v613 = vpack.c.b16 %v567, %v566
  %v614 = vpack.c.b16 %v569, %v568
  %v615 = vpack.c.b16 %v571, %v570
  %v616 = vpack.c.b16 %v573, %v572
  %v617 = vpack.c.b16 %v575, %v574
  %v618 = vpack.c.b16 %v577, %v576
  %v619 = vpack.c.b16 %v579, %v578
  %v620 = vpack.c.b16 %v581, %v580
  %v621 = vpack.c.b16 %v583, %v582
  %v622 = vpack.c.b16 %v585, %v584
  %v623 = vpack.c.b16 %v587, %v586
  %v624 = vpack.c.b16 %v589, %v588
  %v625 = vpack.c.b16 %v591, %v590
  %v626 = vpack.c.b16 %v593, %v592
  %v627 = vpack.c.b16 %v595, %v594
  %660 = vmatprep.subr.bf16.mxu0 0
  %661 = vmatpush1.bf16.msra.mxu0 %v596
  %662 = vmatprep.subr.bf16.mxu0 0
  %663 = vmatpush1.bf16.msra.mxu0 %v597
  %664 = vmatprep.subr.bf16.mxu0 0
  %665 = vmatpush1.bf16.msra.mxu0 %v598
  %666 = vmatprep.subr.bf16.mxu0 0
  %667 = vmatpush1.bf16.msra.mxu0 %v599
  %668 = vmatprep.subr.bf16.mxu0 0
  %669 = vmatpush1.bf16.msra.mxu0 %v600
  %670 = vmatprep.subr.bf16.mxu0 0
  %671 = vmatpush1.bf16.msra.mxu0 %v601
  %672 = vmatprep.subr.bf16.mxu0 0
  %673 = vmatpush1.bf16.msra.mxu0 %v602
  %674 = vmatprep.subr.bf16.mxu0 0
  %675 = vmatpush1.bf16.msra.mxu0 %v603
  %676 = vmatprep.subr.bf16.mxu0 0
  %677 = vmatpush1.bf16.msra.mxu0 %v604
  %678 = vmatprep.subr.bf16.mxu0 0
  %679 = vmatpush1.bf16.msra.mxu0 %v605
  %680 = vmatprep.subr.bf16.mxu0 0
  %681 = vmatpush1.bf16.msra.mxu0 %v606
  %682 = vmatprep.subr.bf16.mxu0 0
  %683 = vmatpush1.bf16.msra.mxu0 %v607
  %684 = vmatprep.subr.bf16.mxu0 0
  %685 = vmatpush1.bf16.msra.mxu0 %v608
  %686 = vmatprep.subr.bf16.mxu0 0
  %687 = vmatpush1.bf16.msra.mxu0 %v609
  %688 = vmatprep.subr.bf16.mxu0 0
  %689 = vmatpush1.bf16.msra.mxu0 %v610
  %690 = vmatprep.subr.bf16.mxu0 0
  %691 = vmatpush1.bf16.msra.mxu0 %v611
  %692 = vmatprep.mubr.bf16.mxu0 %v43
  %693 = vmatmul.mubr.bf16.gmra.mrb[0].mxu0 %v24
  %v694 = vpop.f32.mrb[0].mxu0
  %v695 = vadd.f32 %v463, %v694
  %v696 = vpop.f32.mrb[0].mxu0
  %v697 = vpop.f32.mrb[0].mxu0
  %v698 = vpop.f32.mrb[0].mxu0
  %699 = vdwg.mxu0
  %700 = vmatprep.subr.bf16.mxu0 0
  %701 = vmatpush1.bf16.msra.mxu0 %v612
  %702 = vmatprep.subr.bf16.mxu0 0
  %703 = vmatpush1.bf16.msra.mxu0 %v613
  %704 = vmatprep.subr.bf16.mxu0 0
  %705 = vmatpush1.bf16.msra.mxu0 %v614
  %706 = vmatprep.subr.bf16.mxu0 0
  %707 = vmatpush1.bf16.msra.mxu0 %v615
  %708 = vmatprep.subr.bf16.mxu0 0
  %709 = vmatpush1.bf16.msra.mxu0 %v616
  %710 = vmatprep.subr.bf16.mxu0 0
  %711 = vmatpush1.bf16.msra.mxu0 %v617
  %712 = vmatprep.subr.bf16.mxu0 0
  %713 = vmatpush1.bf16.msra.mxu0 %v618
  %714 = vmatprep.subr.bf16.mxu0 0
  %715 = vmatpush1.bf16.msra.mxu0 %v619
  %716 = vmatprep.subr.bf16.mxu0 0
  %717 = vmatpush1.bf16.msra.mxu0 %v620
  %718 = vmatprep.subr.bf16.mxu0 0
  %719 = vmatpush1.bf16.msra.mxu0 %v621
  %720 = vmatprep.subr.bf16.mxu0 0
  %721 = vmatpush1.bf16.msra.mxu0 %v622
  %722 = vmatprep.subr.bf16.mxu0 0
  %723 = vmatpush1.bf16.msra.mxu0 %v623
  %724 = vmatprep.subr.bf16.mxu0 0
  %725 = vmatpush1.bf16.msra.mxu0 %v624
  %726 = vmatprep.subr.bf16.mxu0 0
  %727 = vmatpush1.bf16.msra.mxu0 %v625
  %728 = vmatprep.subr.bf16.mxu0 0
  %729 = vmatpush1.bf16.msra.mxu0 %v626
  %730 = vmatprep.subr.bf16.mxu0 0
  %731 = vmatpush1.bf16.msra.mxu0 %v627
  %732 = vmatprep.mubr.bf16.mxu0 %v67
  %733 = vmatmul.mubr.bf16.gmra.mrb[0].mxu0 %v50
  %v734 = vpop.f32.mrb[0].mxu0
  %v735 = vadd.f32 %v695, %v734
  %v736 = vpop.f32.mrb[0].mxu0
  %v737 = vpop.f32.mrb[0].mxu0
  %v738 = vpop.f32.mrb[0].mxu0
  %739 = vdwg.mxu0
  %740 = vst [vmem:[%s3] sm:$0xff] %v735
  // Predicated region
  $region14: #{hier_embedding_forward.1} parent=0 // pred_check
    _
  $region15: #{hier_embedding_forward.1} parent=0 // pred_check_branch
    %742 = sbr.rel (0) target = $region17
  $region16: #{hier_embedding_forward.1} parent=0 // pred_region
    _
  $region17: #{hier_embedding_forward.1} parent=0 // pred_fallthru
    _
  // Predicated region
  $region18: #{hier_embedding_forward.1} parent=0 // pred_check
    _
  $region19: #{hier_embedding_forward.1} parent=0 // pred_check_branch
    %744 = sbr.rel (0) target = $region21
  $region20: #{hier_embedding_forward.1} parent=0 // pred_region
    _
  $region21: #{hier_embedding_forward.1} parent=0 // pred_fallthru
    _

</llo_original>
